<compile_context>
chip_gen: v6e
topology: v6e:2x2x1
jax: 0.10.0
libtpu: 0.0.40
codegen_flags: <defaults>
</compile_context>

<pallas_src>
import functools

import jax
import jax.numpy as jnp
from jax.experimental import pallas as pl
from jax.experimental.pallas import tpu as pltpu


def _round_up(x: int, m: int) -> int:
    return ((x + m - 1) // m) * m


def _largest_aligned_divisor(n: int, align: int, target: int) -> int:
    """Largest multiple of `align` that divides `n` and is <= target.

    `n` must itself be a multiple of `align`.  Falls back to `align`.
    """
    c = (min(target, n) // align) * align
    while c >= align:
        if n % c == 0:
            return c
        c -= align
    return align


# ---------------------------------------------------------------------------
# Kernels
# ---------------------------------------------------------------------------
def _ntp_linear_kernel_f32out(x_ref, w_ref, b_ref, o_ref, *, scale):
    """f32 output: accumulate directly into o_ref (resident across K axis)."""
    k = pl.program_id(2)

    @pl.when(k == 0)
    def _():
        o_ref[...] = jnp.zeros_like(o_ref)

    o_ref[...] += jnp.dot(
        x_ref[...], w_ref[...], preferred_element_type=jnp.float32
    )

    @pl.when(k == pl.num_programs(2) - 1)
    def _():
        # Scale + bias applied exactly once per output tile (finalize step).
        o_ref[...] = scale * o_ref[...] + b_ref[...].astype(o_ref.dtype)


def _ntp_linear_kernel_acc(x_ref, w_ref, b_ref, o_ref, acc_ref, *, scale):
    """Narrow output dtype: f32 scratch accumulator, cast on finalize."""
    k = pl.program_id(2)

    @pl.when(k == 0)
    def _():
        acc_ref[...] = jnp.zeros_like(acc_ref)

    acc_ref[...] += jnp.dot(
        x_ref[...], w_ref[...], preferred_element_type=jnp.float32
    )

    @pl.when(k == pl.num_programs(2) - 1)
    def _():
        out = scale * acc_ref[...] + b_ref[...].astype(jnp.float32)
        o_ref[...] = out.astype(o_ref.dtype)


# ---------------------------------------------------------------------------
# Wrapper
# ---------------------------------------------------------------------------
def ntp_linear(x, weight, bias, *, cast_inputs_to_bf16: bool = False):
    """(1/sqrt(in_features)) * (x @ weight) + bias via a tiled Pallas kernel."""
    M, K = x.shape
    Kw, N = weight.shape
    assert K == Kw, "x / weight inner dims must match"
    assert bias.shape == (1, N)

    out_dtype = x.dtype
    # Scale uses the *true* in_features (not the padded K).
    scale = 1.0 / (K ** 0.5)

    if cast_inputs_to_bf16:
        # Optional fast path (MXU is bf16-native; halves W HBM traffic).
        # Changes numerics slightly, so off by default.
        x = x.astype(jnp.bfloat16)
        weight = weight.astype(jnp.bfloat16)

    # ---- alignment padding only (never to tile multiples) -------------------
    Mp = _round_up(M, 8)
    Np = _round_up(N, 128)
    Kp = _round_up(K, 128)

    if (Mp, Kp) != (M, K):
        x = jnp.pad(x, ((0, Mp - M), (0, Kp - K)))
    if (Kp, Np) != (K, N):
        weight = jnp.pad(weight, ((0, Kp - K), (0, Np - N)))
    if Np != N:
        bias = jnp.pad(bias, ((0, 0), (0, Np - N)))

    # ---- tile selection ------------------------------------------------------
    if M <= 64:
        # Small-M (inference) path: tiny acc tile, large W slab per grid step.
        tm_target, tn_target, tk_target = Mp, 2048, 1024
    else:
        tm_target, tn_target, tk_target = 512, 512, 1024

    tm_eff = _largest_aligned_divisor(Mp, 8, tm_target)
    tn_eff = _largest_aligned_divisor(Np, 128, tn_target)
    tk_eff = _largest_aligned_divisor(Kp, 128, tk_target)

    # v7x has 2 TensorCores: make sure at least one parallel axis has extent >= 2
    # when the problem allows it (split N, since re-reading the small x is cheap).
    if Mp // tm_eff == 1 and Np // tn_eff == 1 and Np // 128 >= 2:
        tn_eff = _largest_aligned_divisor(Np, 128, Np // 2)

    grid_m = Mp // tm_eff
    grid_n = Np // tn_eff
    grid_k = Kp // tk_eff
    grid = (grid_m, grid_n, grid_k)

    # ---- kernel variant / scratch -------------------------------------------
    use_acc_scratch = jnp.dtype(out_dtype) != jnp.dtype(jnp.float32)
    if use_acc_scratch:
        kernel = functools.partial(_ntp_linear_kernel_acc, scale=scale)
        scratch_shapes = [pltpu.VMEM((tm_eff, tn_eff), jnp.float32)]
    else:
        kernel = functools.partial(_ntp_linear_kernel_f32out, scale=scale)
        scratch_shapes = []

    # ---- VMEM budget derived from the actual tile footprint ------------------
    x_item = jnp.dtype(x.dtype).itemsize
    w_item = jnp.dtype(weight.dtype).itemsize
    b_item = jnp.dtype(bias.dtype).itemsize
    o_item = jnp.dtype(out_dtype).itemsize
    footprint = (
        2 * tm_eff * tk_eff * x_item      # x, double-buffered
        + 2 * tk_eff * tn_eff * w_item    # W, double-buffered
        + 2 * tm_eff * tn_eff * o_item    # out, double-buffered
        + 2 * tn_eff * b_item             # bias, double-buffered
    )
    if use_acc_scratch:
        footprint += tm_eff * tn_eff * 4
    try:
        vmem_cap = int(getattr(pltpu.get_tpu_info(), "vmem_capacity_bytes", 64 << 20))
    except Exception:  # pragma: no cover - conservative fallback (v7x per-TC size)
        vmem_cap = 64 << 20
    vmem_limit = min(int(footprint * 1.25) + (4 << 20), (vmem_cap * 3) // 4)
    vmem_limit = max(vmem_limit, footprint + (2 << 20))

    # ---- cost estimate (actual HBM traffic) ----------------------------------
    cost = pl.CostEstimate(
        flops=2 * Mp * Np * Kp,
        transcendentals=0,
        bytes_accessed=(
            grid_n * Mp * Kp * x_item     # x re-read once per N tile
            + grid_m * Kp * Np * w_item   # W re-read once per M tile
            + Np * b_item                 # bias
            + Mp * Np * o_item            # output write
        ),
    )

    out = pl.pallas_call(
        kernel,
        out_shape=jax.ShapeDtypeStruct((Mp, Np), out_dtype),
        grid_spec=pltpu.PrefetchScalarGridSpec(
            num_scalar_prefetch=0,
            grid=grid,
            in_specs=[
                pl.BlockSpec((tm_eff, tk_eff), lambda i, j, k: (i, k)),  # x tile
                pl.BlockSpec((tk_eff, tn_eff), lambda i, j, k: (k, j)),  # W tile
                pl.BlockSpec((1, tn_eff), lambda i, j, k: (0, j)),       # bias tile
            ],
            out_specs=pl.BlockSpec((tm_eff, tn_eff), lambda i, j, k: (i, j)),
            scratch_shapes=scratch_shapes,
        ),
        compiler_params=pltpu.CompilerParams(
            dimension_semantics=("parallel", "parallel", "arbitrary"),
            vmem_limit_bytes=vmem_limit,
        ),
        cost_estimate=cost,
    )(x, weight, bias)

    if (Mp, Np) != (M, N):
        out = out[:M, :N]
    return out


# ---------------------------------------------------------------------------
# Tests
# ---------------------------------------------------------------------------
if __name__ == "__main__":
    # --- Small test at the module-consistent toy shape -----------------------
    in_features = 32
    out_features = 32
    batch = 8
    zero_init = False

    key = jax.random.PRNGKey(0)
    kx, kw, kb = jax.random.split(key, 3)

    factor = 0.0 if zero_init else 1.0
    weight = factor * jax.random.normal(kw, (in_features, out_features), jnp.float32)
    bias = factor * jax.random.normal(kb, (1, out_features), jnp.float32)
    x = jax.random.normal(kx, (batch, in_features), jnp.float32)

    y = jax.block_until_ready(ntp_linear(x, weight, bias))
    y_ref = (1.0 / (in_features ** 0.5)) * jnp.dot(
        x, weight, precision=jax.lax.Precision.HIGHEST
    ) + bias
    assert y.shape == (batch, out_features)
    assert jnp.allclose(y, y_ref, atol=1e-4, rtol=1e-4)

    # --- Larger test: (M,N,K) grid, direct-output accumulation, ragged N -----
    M2, K2, N2 = 512, 1024, 384  # N2 = 3*128 -> no weight padding needed now
    kx2, kw2, kb2 = jax.random.split(jax.random.PRNGKey(1), 3)
    x2 = jax.random.normal(kx2, (M2, K2), jnp.float32)
    w2 = jax.random.normal(kw2, (K2, N2), jnp.float32)
    b2 = jax.random.normal(kb2, (1, N2), jnp.float32)

    y2 = jax.block_until_ready(ntp_linear(x2, w2, b2))
    y2_ref = (1.0 / (K2 ** 0.5)) * jnp.dot(
        x2, w2, precision=jax.lax.Precision.HIGHEST
    ) + b2
    assert y2.shape == (M2, N2)
    assert jnp.allclose(y2, y2_ref, atol=1e-3, rtol=1e-3)

    # --- Small-M path test: wide-N / wide-K tiles, split N for 2-TC parallel --
    M3, K3, N3 = 8, 256, 512
    kx3, kw3, kb3 = jax.random.split(jax.random.PRNGKey(2), 3)
    x3 = jax.random.normal(kx3, (M3, K3), jnp.float32)
    w3 = jax.random.normal(kw3, (K3, N3), jnp.float32)
    b3 = jax.random.normal(kb3, (1, N3), jnp.float32)

    y3 = jax.block_until_ready(ntp_linear(x3, w3, b3))
    y3_ref = (1.0 / (K3 ** 0.5)) * jnp.dot(
        x3, w3, precision=jax.lax.Precision.HIGHEST
    ) + b3
    assert y3.shape == (M3, N3)
    assert jnp.allclose(y3, y3_ref, atol=1e-3, rtol=1e-3)

    print("KERNEL_OK")
</pallas_src>

<mosaic_0001>
module attributes {stable_mosaic.version = 11 : i64} {
  func.func @_ntp_linear_kernel_f32out(%arg0: i32, %arg1: i32, %arg2: i32, %arg3: memref<8x128xf32, #tpu.memory_space<vmem>>, %arg4: memref<128x128xf32, #tpu.memory_space<vmem>>, %arg5: memref<1x128xf32, #tpu.memory_space<vmem>>, %arg6: memref<8x128xf32, #tpu.memory_space<vmem>>) attributes {dimension_semantics = [#tpu.dimension_semantics<parallel>, #tpu.dimension_semantics<parallel>, #tpu.dimension_semantics<arbitrary>], iteration_bounds = array<i64: 1, 1, 1>, scalar_prefetch = 0 : i64, scratch_operands = 0 : i64, tpu.core_type = #tpu.core_type<tc>, window_params = [{transform_indices = @transform_0, window_bounds = array<i64: 8, 128>}, {transform_indices = @transform_1, window_bounds = array<i64: 128, 128>}, {transform_indices = @transform_2, window_bounds = array<i64: 1, 128>}, {transform_indices = @transform_3, window_bounds = array<i64: 8, 128>}]} {
    %c0_i32 = arith.constant 0 : i32
    %0 = arith.cmpi eq, %arg2, %c0_i32 : i32
    %1 = arith.extui %0 : i1 to i32
    %c0_i32_0 = arith.constant 0 : i32
    %2 = arith.cmpi ne, %1, %c0_i32_0 : i32
    scf.if %2 {
      %cst_10 = arith.constant 0.000000e+00 : f32
      %12 = vector.broadcast %cst_10 : f32 to vector<8x128xf32>
      %c0_11 = arith.constant 0 : index
      %c0_12 = arith.constant 0 : index
      %13 = vector.load %arg6[%c0_11, %c0_12] : memref<8x128xf32, #tpu.memory_space<vmem>>, vector<8x128xf32>
      tpu.vector_store %arg6[%c0_11, %c0_12], %12 {strides = array<i32>} : memref<8x128xf32, #tpu.memory_space<vmem>>, vector<8x128xf32>,
    } else {
    }
    %c0 = arith.constant 0 : index
    %c0_1 = arith.constant 0 : index
    %3 = vector.load %arg6[%c0, %c0_1] : memref<8x128xf32, #tpu.memory_space<vmem>>, vector<8x128xf32>
    %c0_2 = arith.constant 0 : index
    %c0_3 = arith.constant 0 : index
    %4 = vector.load %arg3[%c0_2, %c0_3] : memref<8x128xf32, #tpu.memory_space<vmem>>, vector<8x128xf32>
    %c0_4 = arith.constant 0 : index
    %c0_5 = arith.constant 0 : index
    %5 = vector.load %arg4[%c0_4, %c0_5] : memref<128x128xf32, #tpu.memory_space<vmem>>, vector<128x128xf32>
    %cst = arith.constant dense<0.000000e+00> : vector<8x128xf32>
    %6 = tpu.matmul %4, %5, %cst {dimension_numbers = #tpu.dot_dimension_numbers<[1], [0], [0], [1], [0, 0, 1, 1], [], []>} : vector<8x128xf32>, vector<128x128xf32>, vector<8x128xf32> -> vector<8x128xf32>
    %7 = arith.addf %3, %6 : vector<8x128xf32>
    %c0_6 = arith.constant 0 : index
    %c0_7 = arith.constant 0 : index
    %8 = vector.load %arg6[%c0_6, %c0_7] : memref<8x128xf32, #tpu.memory_space<vmem>>, vector<8x128xf32>
    tpu.vector_store %arg6[%c0_6, %c0_7], %7 {strides = array<i32>} : memref<8x128xf32, #tpu.memory_space<vmem>>, vector<8x128xf32>,
    %c0_i32_8 = arith.constant 0 : i32
    %9 = arith.cmpi eq, %arg2, %c0_i32_8 : i32
    %10 = arith.extui %9 : i1 to i32
    %c0_i32_9 = arith.constant 0 : i32
    %11 = arith.cmpi ne, %10, %c0_i32_9 : i32
    scf.if %11 {
      %c0_10 = arith.constant 0 : index
      %c0_11 = arith.constant 0 : index
      %12 = vector.load %arg6[%c0_10, %c0_11] : memref<8x128xf32, #tpu.memory_space<vmem>>, vector<8x128xf32>
      %cst_12 = arith.constant 0.176776692 : f32
      %13 = vector.broadcast %cst_12 : f32 to vector<8x128xf32>
      %14 = arith.mulf %13, %12 : vector<8x128xf32>
      %c0_13 = arith.constant 0 : index
      %c0_14 = arith.constant 0 : index
      %15 = vector.load %arg5[%c0_13, %c0_14] : memref<1x128xf32, #tpu.memory_space<vmem>>, vector<1x128xf32>
      %16 = vector.broadcast %15 : vector<1x128xf32> to vector<8x128xf32>
      %17 = arith.addf %14, %16 : vector<8x128xf32>
      %c0_15 = arith.constant 0 : index
      %c0_16 = arith.constant 0 : index
      %18 = vector.load %arg6[%c0_15, %c0_16] : memref<8x128xf32, #tpu.memory_space<vmem>>, vector<8x128xf32>
      tpu.vector_store %arg6[%c0_15, %c0_16], %17 {strides = array<i32>} : memref<8x128xf32, #tpu.memory_space<vmem>>, vector<8x128xf32>,
    } else {
    }
    return
  }
  func.func @transform_0(%arg0: i32, %arg1: i32, %arg2: i32) -> (i32, i32) {
    %c0_i32 = arith.constant 0 : i32
    return %arg0, %arg2 : i32, i32
  }
  func.func @transform_1(%arg0: i32, %arg1: i32, %arg2: i32) -> (i32, i32) {
    %c0_i32 = arith.constant 0 : i32
    return %arg2, %arg1 : i32, i32
  }
  func.func @transform_2(%arg0: i32, %arg1: i32, %arg2: i32) -> (i32, i32) {
    %c0_i32 = arith.constant 0 : i32
    %c0_i32_0 = arith.constant 0 : i32
    return %c0_i32, %arg1 : i32, i32
  }
  func.func @transform_3(%arg0: i32, %arg1: i32, %arg2: i32) -> (i32, i32) {
    %c0_i32 = arith.constant 0 : i32
    return %arg0, %arg1 : i32, i32
  }
}

</mosaic_0001>

<llo_original>
// kernel: tpu_custom_call.1
$region0: #{tpu_custom_call.1}
  #allocation0 [shape = 'u32[]', space=smem, size = 0x4, offset = 0x4, fixed_abs, tag = 'smem constant byte address 0x4 - core index']
  #allocation1 [shape = 'u32[144,128]{1,0:T(1,128)}', space=vmem, size = 0x12000, scoped, tag = 'internal scratch']
  %s0 = inlined_call_operand.hbm [shape: f32[8,128], index: 0, kind: input, shape index: {}]
  %s1 = inlined_call_operand.hbm [shape: f32[128,128], index: 1, kind: input, shape index: {}]
  %s2 = inlined_call_operand.vmem [shape: f32[1,128], index: 2, kind: input, shape index: {}]
  %s3 = inlined_call_operand.hbm [shape: f32[8,128], index: 3, kind: output, shape index: {}]
  %s4 = sld [smem:[#allocation0]]
  $region38: #{tpu_custom_call.1} parent=0
    _
  %s6 = ssub.s32 1, %s4
  %s7 = scalar_select 0, %s6, %s4
  $region1: #{tpu_custom_call.1} parent=0
    #allocation2 [shape = 'u8[4096]{0}', space=vmem, size = 0x1000, scoped, tag = 'input window, operand 0, single buffered']
    #allocation3 [shape = 's32[1]{0}', space=sflag, size = 0x4, scoped, tag = 'scoped memory for tpu_custom_call.1']
    #allocation4 [shape = 's32[1]{0}', space=sflag, size = 0x4, scoped, tag = 'scoped memory for tpu_custom_call.1']
    #allocation5 [shape = 'u8[65536]{0}', space=vmem, size = 0x10000, scoped, tag = 'input window, operand 1, single buffered']
    #allocation6 [shape = 's32[1]{0}', space=sflag, size = 0x4, scoped, tag = 'scoped memory for tpu_custom_call.1']
    #allocation7 [shape = 'u8[4096]{0}', space=vmem, size = 0x1000, scoped, tag = 'output window, operand 0, single buffered']
    %8 = vsyncpa [#allocation3], 0
    %9 = vsyncpa [#allocation6], 0
    %10 = vsyncpa [#allocation4], 0
    // Predicated region
    $region2: #{tpu_custom_call.1} parent=1 // pred_check
      _
    $region3: #{tpu_custom_call.1} parent=1 // pred_check_branch
      %12 = sbr.rel (0) target = $region5
    $region4: #{tpu_custom_call.1} parent=1 // pred_region
      %s14 = ssub.s32 128, 128
      %15 = vsyncadd [#allocation3], %s14
      %s17 = sshll.u32 [#allocation2], 4
      %s18 = int_to_ptr.vmem [resolvable:$true] %s17
      %20 = dma.hbm_to_vmem [thread:$0]  %s0, 128, %s18, [#allocation3]
    $region5: #{tpu_custom_call.1} parent=1 // pred_fallthru
      _
    // Predicated region
    $region6: #{tpu_custom_call.1} parent=1 // pred_check
      _
    $region7: #{tpu_custom_call.1} parent=1 // pred_check_branch
      %22 = sbr.rel (0) target = $region9
    $region8: #{tpu_custom_call.1} parent=1 // pred_region
      %s24 = ssub.s32 2048, 2048
      %25 = vsyncadd [#allocation6], %s24
      %s26 = sshll.u32 [#allocation5], 4
      %s27 = int_to_ptr.vmem [resolvable:$true] %s26
      %32 = dma.hbm_to_vmem [thread:$0]  %s1, 2048, %s27, [#allocation6], 128, 128, 8
    $region9: #{tpu_custom_call.1} parent=1 // pred_fallthru
      _
    // Predicated region
    $region10: #{tpu_custom_call.1} parent=1 // pred_check
      _
    $region11: #{tpu_custom_call.1} parent=1 // pred_check_branch
      %34 = sbr.rel (0) target = $region13
    $region12: #{tpu_custom_call.1} parent=1 // pred_region
      _
    $region13: #{tpu_custom_call.1} parent=1 // pred_fallthru
      _
    // Predicated region
    $region14: #{tpu_custom_call.1} parent=1 // pred_check
      _
    $region15: #{tpu_custom_call.1} parent=1 // pred_check_branch
      %36 = sbr.rel (0) target = $region17
    $region16: #{tpu_custom_call.1} parent=1 // pred_region
      %37 = dma.done [#allocation3], 128
    $region17: #{tpu_custom_call.1} parent=1 // pred_fallthru
      _
    // Predicated region
    $region18: #{tpu_custom_call.1} parent=1 // pred_check
      _
    $region19: #{tpu_custom_call.1} parent=1 // pred_check_branch
      %39 = sbr.rel (0) target = $region21
    $region20: #{tpu_custom_call.1} parent=1 // pred_region
      %40 = dma.done [#allocation6], 2048
    $region21: #{tpu_custom_call.1} parent=1 // pred_fallthru
      _
    %p41 = scmp.eq.s32.totalorder 0, 0
    // Predicated region
    $region22: #{tpu_custom_call.1} parent=1 // pred_check
      %p42 = pneg %p41
    $region23: #{tpu_custom_call.1} parent=1 // pred_check_branch
      %44 = sbr.rel (%p42) target = $region25
    $region24: #{tpu_custom_call.1} parent=1 // pred_region
      %45 = vst [vmem:[#allocation7] sm:$0xff] 0.0
    $region25: #{tpu_custom_call.1} parent=1 // pred_fallthru
      _
    %v46 = vld [vmem:[#allocation7] sm:$0xff]
    %v47 = vld [vmem:[#allocation2] sm:$0xff]
    %v48 = vld [vmem:[#allocation5] sm:$0xff]
    %v49 = vld [vmem:[#allocation5 + $0x8] sm:$0xff]
    %v50 = vld [vmem:[#allocation5 + $0x10] sm:$0xff]
    %v51 = vld [vmem:[#allocation5 + $0x18] sm:$0xff]
    %v52 = vld [vmem:[#allocation5 + $0x20] sm:$0xff]
    %v53 = vld [vmem:[#allocation5 + $0x28] sm:$0xff]
    %v54 = vld [vmem:[#allocation5 + $0x30] sm:$0xff]
    %v55 = vld [vmem:[#allocation5 + $0x38] sm:$0xff]
    %v56 = vld [vmem:[#allocation5 + $0x40] sm:$0xff]
    %v57 = vld [vmem:[#allocation5 + $0x48] sm:$0xff]
    %v58 = vld [vmem:[#allocation5 + $0x50] sm:$0xff]
    %v59 = vld [vmem:[#allocation5 + $0x58] sm:$0xff]
    %v60 = vld [vmem:[#allocation5 + $0x60] sm:$0xff]
    %v61 = vld [vmem:[#allocation5 + $0x68] sm:$0xff]
    %v62 = vld [vmem:[#allocation5 + $0x70] sm:$0xff]
    %v63 = vld [vmem:[#allocation5 + $0x78] sm:$0xff]
    %64 = vmatprep.subr.mxu0 0.0
    %65 = vmatpush1.msra.mxu0 %v63
    %66 = vmatprep.subr.mxu0 0.0
    %67 = vmatpush1.msra.mxu0 %v62
    %68 = vmatprep.subr.mxu0 0.0
    %69 = vmatpush1.msra.mxu0 %v61
    %70 = vmatprep.subr.mxu0 0.0
    %71 = vmatpush1.msra.mxu0 %v60
    %72 = vmatprep.subr.mxu0 0.0
    %73 = vmatpush1.msra.mxu0 %v59
    %74 = vmatprep.subr.mxu0 0.0
    %75 = vmatpush1.msra.mxu0 %v58
    %76 = vmatprep.subr.mxu0 0.0
    %77 = vmatpush1.msra.mxu0 %v57
    %78 = vmatprep.subr.mxu0 0.0
    %79 = vmatpush1.msra.mxu0 %v56
    %80 = vmatprep.subr.mxu0 0.0
    %81 = vmatpush1.msra.mxu0 %v55
    %82 = vmatprep.subr.mxu0 0.0
    %83 = vmatpush1.msra.mxu0 %v54
    %84 = vmatprep.subr.mxu0 0.0
    %85 = vmatpush1.msra.mxu0 %v53
    %86 = vmatprep.subr.mxu0 0.0
    %87 = vmatpush1.msra.mxu0 %v52
    %88 = vmatprep.subr.mxu0 0.0
    %89 = vmatpush1.msra.mxu0 %v51
    %90 = vmatprep.subr.mxu0 0.0
    %91 = vmatpush1.msra.mxu0 %v50
    %92 = vmatprep.subr.mxu0 0.0
    %93 = vmatpush1.msra.mxu0 %v49
    %94 = vmatprep.subr.mxu0 0.0
    %95 = vmatpush1.msra.mxu0 %v48
    %96 = vmatprep.subr.mxu0 0.0
    %97 = vmatpush2.msra.mxu0 0.0
    %98 = vmatprep.subr.mxu0 0.0
    %99 = vmatpush2.msra.mxu0 0.0
    %100 = vmatprep.subr.mxu0 0.0
    %101 = vmatpush2.msra.mxu0 0.0
    %102 = vmatprep.subr.mxu0 0.0
    %103 = vmatpush2.msra.mxu0 0.0
    %104 = vmatprep.subr.mxu0 0.0
    %105 = vmatpush2.msra.mxu0 0.0
    %106 = vmatprep.subr.mxu0 0.0
    %107 = vmatpush2.msra.mxu0 0.0
    %108 = vmatprep.subr.mxu0 0.0
    %109 = vmatpush2.msra.mxu0 0.0
    %110 = vmatprep.subr.mxu0 0.0
    %111 = vmatpush2.msra.mxu0 0.0
    %112 = vmatprep.subr.mxu0 0.0
    %113 = vmatpush2.msra.mxu0 0.0
    %114 = vmatprep.subr.mxu0 0.0
    %115 = vmatpush2.msra.mxu0 0.0
    %116 = vmatprep.subr.mxu0 0.0
    %117 = vmatpush2.msra.mxu0 0.0
    %118 = vmatprep.subr.mxu0 0.0
    %119 = vmatpush2.msra.mxu0 0.0
    %120 = vmatprep.subr.mxu0 0.0
    %121 = vmatpush2.msra.mxu0 0.0
    %122 = vmatprep.subr.mxu0 0.0
    %123 = vmatpush2.msra.mxu0 0.0
    %124 = vmatprep.subr.mxu0 0.0
    %125 = vmatpush2.msra.mxu0 0.0
    %126 = vmatprep.subr.mxu0 0.0
    %127 = vmatpush2.msra.mxu0 0.0
    %128 = vmatprep.mubr.f32.mxu0 0.0
    %129 = vmatmul.mubr.f32.gmra.mxu0 %v47
    %v130 = vpop.f32.mrf.mxu0
    %v131 = vadd.f32 0.0, %v130
    %v132 = vpop.f32.mrf.mxu0
    %133 = vdwg.mxu0
    %v134 = vadd.f32 %v46, %v131
    %135 = vst [vmem:[#allocation7] sm:$0xff] %v134
    // Predicated region
    $region26: #{tpu_custom_call.1} parent=1 // pred_check
      %p136 = pneg %p41
    $region27: #{tpu_custom_call.1} parent=1 // pred_check_branch
      %138 = sbr.rel (%p136) target = $region29
    $region28: #{tpu_custom_call.1} parent=1 // pred_region
      %v139 = vld [vmem:[#allocation7] sm:$0xff]
      %v140 = vmul.f32 %v139, 0.17677669
      %v141 = vld [vmem:[%s2] sm:$0x1]
      %v143 = vlaneseq
      %v144 = vshrl.u32 %v143, 7
      %v145 = vsub.s32 0, %v144
      %v146 = vrot.slane %v141, %v145
      %v148 = vadd.f32 %v140, %v146
      %149 = vst [vmem:[#allocation7] sm:$0xff] %v148
    $region29: #{tpu_custom_call.1} parent=1 // pred_fallthru
      _
    // Predicated region
    $region30: #{tpu_custom_call.1} parent=1 // pred_check
      _
    $region31: #{tpu_custom_call.1} parent=1 // pred_check_branch
      %151 = sbr.rel (0) target = $region33
    $region32: #{tpu_custom_call.1} parent=1 // pred_region
      %s153 = ssub.s32 128, 128
      %154 = vsyncadd [#allocation4], %s153
      %s156 = sshll.u32 [#allocation7], 4
      %s157 = int_to_ptr.vmem [resolvable:$true] %s156
      %159 = dma.vmem_to_hbm [thread:$0]  %s157, 128, %s3, [#allocation4]
    $region33: #{tpu_custom_call.1} parent=1 // pred_fallthru
      _
    // Predicated region
    $region34: #{tpu_custom_call.1} parent=1 // pred_check
      _
    $region35: #{tpu_custom_call.1} parent=1 // pred_check_branch
      %161 = sbr.rel (0) target = $region37
    $region36: #{tpu_custom_call.1} parent=1 // pred_region
      %162 = dma.done [#allocation4], 128
    $region37: #{tpu_custom_call.1} parent=1 // pred_fallthru
      _
    %163 = vsyncpa [#allocation3], 1
    %164 = vsyncpa [#allocation6], 1
    %165 = vsyncpa [#allocation4], 1

</llo_original>
